<compile_context>
chip_gen: v6e
topology: v6e:2x2x1
jax: 0.10.0
libtpu: 0.0.40
codegen_flags: <defaults>
</compile_context>

<pallas_src>
import functools

import jax
import jax.numpy as jnp
from jax.experimental import pallas as pl
from jax.experimental.pallas import tpu as pltpu

_MAX_ROWS = 512        # target max rows per batch tile
_MAX_BLOCK_N = 512     # target max lanes per output tile


# ----------------------------- kernels ------------------------------------ #

def _td_matmul_kernel(d_ref, wt_ref, b_ref, o_ref):
    """grid_n == 1: bias block == full bias, fully static."""
    g = jnp.dot(d_ref[...], wt_ref[...], preferred_element_type=jnp.float32)
    g = g + b_ref[...].astype(jnp.float32)            # (1, block_n) broadcast
    o_ref[...] = jnp.exp(-jnp.maximum(g, 0.0)).astype(o_ref.dtype)


def _make_matmul_kernel_resident_bias(block_n):
    """grid_n > 1: bias stays fully resident in VMEM; slice current window."""
    def kernel(d_ref, wt_ref, b_ref, o_ref):
        g = jnp.dot(d_ref[...], wt_ref[...], preferred_element_type=jnp.float32)
        start = pl.multiple_of(pl.program_id(1) * block_n, 128)
        g = g + b_ref[:, pl.ds(start, block_n)].astype(jnp.float32)
        o_ref[...] = jnp.exp(-jnp.maximum(g, 0.0)).astype(o_ref.dtype)
    return kernel


def _td_diag_kernel(d_ref, wdiag_ref, b_ref, o_ref):
    """diag(W) linear == per-feature scale: pure VPU + EUP, no MXU, f32 math."""
    g = (d_ref[...].astype(jnp.float32) * wdiag_ref[...].astype(jnp.float32)
         + b_ref[...].astype(jnp.float32))
    o_ref[...] = jnp.exp(-jnp.maximum(g, 0.0)).astype(o_ref.dtype)


# ----------------------------- helpers ------------------------------------- #

def _round_up(x, m):
    return ((x + m - 1) // m) * m


def _sublane_pack(dtype):
    # Rows per packed vreg tile: 8 for 4-byte, 16 for 2-byte, 32 for 1-byte.
    return max(8, 32 // jnp.dtype(dtype).itemsize)


def _resolve_block_b(batch, block_b, pack):
    if block_b is None:
        block_b = batch if batch <= _MAX_ROWS else _MAX_ROWS
    block_b = _round_up(block_b, pack)
    if block_b >= batch:
        block_b = batch          # full-dim block: exempt from the sublane rule
    return block_b


def _pick_block_n(n_padded):
    # Largest multiple of 128 that divides the (128-padded) out dim, <= 512.
    k = n_padded // 128
    for dd in range(min(k, _MAX_BLOCK_N // 128), 0, -1):
        if k % dd == 0:
            return 128 * dd
    return 128


def _vmem_limit_bytes(tile_bytes):
    # Real tile footprint x headroom for double-buffering + f32 temporaries,
    # clamped to [16 MiB, 32 MiB] (32 MiB is safe on v7x's 64 MiB VMEM too).
    return int(min(max(4 * tile_bytes, 16 << 20), 32 << 20))


# ------------------------- parameter preparation --------------------------- #

def prepare_params(W, b, *, diag=False, param_dtype=None):
    """One-time weight prep.  Call ONCE (outside any scan / time loop).

    Returns a dict consumed by `temporal_decay_forward_prepared`.
    """
    out_size, in_size = W.shape
    if param_dtype is not None:
        W = W.astype(param_dtype)
        b = b.astype(param_dtype)

    if diag:
        assert in_size == out_size, "diag=True requires input_size == output_size"
        w_diag = jnp.diagonal(W).reshape(1, out_size)
        return dict(diag=True, w=w_diag, b=b.reshape(1, out_size),
                    in_size=in_size, out_size=out_size, n_padded=out_size)

    # MXU-native layout (no in-kernel transpose) + 128-lane pad for dense stores.
    w_t = jnp.transpose(W)                      # (in, out)
    b2 = b.reshape(1, out_size)
    n_padded = _round_up(out_size, 128)
    if n_padded != out_size:
        w_t = jnp.pad(w_t, ((0, 0), (0, n_padded - out_size)))
        b2 = jnp.pad(b2, ((0, 0), (0, n_padded - out_size)))
    return dict(diag=False, w=w_t, b=b2,
                in_size=in_size, out_size=out_size, n_padded=n_padded)


# ------------------------------- forward ----------------------------------- #

def temporal_decay_forward_prepared(d, params, *, block_b=None, block_n=None,
                                    out_dtype=None):
    """gamma = exp(-relu(linear(d, W*(I if diag else 1), b))) with prepped params."""
    batch, in_size = d.shape
    assert in_size == params["in_size"]
    out_size = params["out_size"]
    if out_dtype is None:
        out_dtype = d.dtype
    out_dtype = jnp.dtype(out_dtype)

    pack = max(_sublane_pack(d.dtype), _sublane_pack(out_dtype))
    block_b = _resolve_block_b(batch, block_b, pack)
    grid_b = pl.cdiv(batch, block_b)

    if params["diag"]:
        # ---------------- diag fast path: elementwise ----------------
        # All block last-dims equal the full array dims -> no padding needed,
        # no extra HBM pass over d; ragged batch handled by masked boundary block.
        tile_bytes = (block_b * in_size * (d.dtype.itemsize + out_dtype.itemsize + 4)
                      + 2 * in_size * params["w"].dtype.itemsize)
        out = pl.pallas_call(
            _td_diag_kernel,
            out_shape=jax.ShapeDtypeStruct((batch, out_size), out_dtype),
            grid_spec=pltpu.PrefetchScalarGridSpec(
                num_scalar_prefetch=0,
                grid=(grid_b,),
                in_specs=[
                    pl.BlockSpec((block_b, in_size), lambda i: (i, 0)),   # d
                    pl.BlockSpec((1, in_size), lambda i: (0, 0)),         # diag(W)
                    pl.BlockSpec((1, in_size), lambda i: (0, 0)),         # bias
                ],
                out_specs=pl.BlockSpec((block_b, out_size), lambda i: (i, 0)),
            ),
            compiler_params=pltpu.CompilerParams(
                dimension_semantics=("parallel",),
                vmem_limit_bytes=_vmem_limit_bytes(tile_bytes),
            ),
        )(d, params["w"], params["b"])
        return out

    # ---------------- general path: tiled MXU matmul ----------------
    n_padded = params["n_padded"]
    if block_n is None:
        block_n = _pick_block_n(n_padded)
    block_n = min(_round_up(block_n, 128), n_padded)
    if n_padded % block_n:
        block_n = _pick_block_n(n_padded)
    grid_n = n_padded // block_n

    w_t, b2 = params["w"], params["b"]
    if grid_n == 1:
        kernel = _td_matmul_kernel
    else:
        kernel = _make_matmul_kernel_resident_bias(block_n)

    tile_bytes = (block_b * in_size * d.dtype.itemsize
                  + in_size * block_n * w_t.dtype.itemsize
                  + n_padded * b2.dtype.itemsize
                  + block_b * block_n * (out_dtype.itemsize + 4))

    out = pl.pallas_call(
        kernel,
        out_shape=jax.ShapeDtypeStruct((batch, n_padded), out_dtype),
        grid_spec=pltpu.PrefetchScalarGridSpec(
            num_scalar_prefetch=0,
            grid=(grid_b, grid_n),
            in_specs=[
                pl.BlockSpec((block_b, in_size), lambda i, j: (i, 0)),    # d
                pl.BlockSpec((in_size, block_n), lambda i, j: (0, j)),    # W^T
                pl.BlockSpec((1, n_padded), lambda i, j: (0, 0)),         # bias (resident)
            ],
            out_specs=pl.BlockSpec((block_b, block_n), lambda i, j: (i, j)),
        ),
        compiler_params=pltpu.CompilerParams(
            dimension_semantics=("parallel", "parallel"),
            vmem_limit_bytes=_vmem_limit_bytes(tile_bytes),
        ),
    )(d, w_t, b2)

    if n_padded != out_size:
        out = out[:, :out_size]     # drop padded lanes (zero-cols -> gamma==1)
    return out


def temporal_decay_forward(d, W, b, *, diag=False, block_b=None, block_n=None,
                           out_dtype=None, param_dtype=None):
    """One-shot convenience wrapper.  Inside a BRITS/RITS time loop, prefer
    calling `prepare_params` once and `temporal_decay_forward_prepared` per step."""
    params = prepare_params(W, b, diag=diag, param_dtype=param_dtype)
    return temporal_decay_forward_prepared(d, params, block_b=block_b,
                                           block_n=block_n, out_dtype=out_dtype)


# ----------------------------- utilities ----------------------------------- #

def init_params(key, input_size, output_size, dtype=jnp.float32):
    # Matches reset_parameters: uniform(-stdv, stdv), stdv = 1/sqrt(output_size)
    stdv = 1.0 / (output_size ** 0.5)
    kw, kb = jax.random.split(key)
    W = jax.random.uniform(kw, (output_size, input_size), dtype,
                           minval=-stdv, maxval=stdv)
    b = jax.random.uniform(kb, (output_size,), dtype,
                           minval=-stdv, maxval=stdv)
    return W, b


def reference_forward(d, W, b, diag=False):
    if diag:
        W = W * jnp.eye(W.shape[0], dtype=W.dtype)
    g = d.astype(jnp.float32) @ W.astype(jnp.float32).T + b.astype(jnp.float32)
    return jnp.exp(-jnp.maximum(g, 0.0))


# ------------------------------- demo -------------------------------------- #

if __name__ == "__main__":
    key = jax.random.PRNGKey(0)
    k_d1, k_p1, k_p2, k_d3, k_p3, k_d4 = jax.random.split(key, 6)

    # Case 1: non-diag, out_size != in_size (exercises 128-lane pad of W^T/bias
    #         at prep time + output slice; d itself is never padded).
    batch, in_size, out_size = 8, 32, 48
    d = jax.random.uniform(k_d1, (batch, in_size), jnp.float32,
                           minval=0.0, maxval=5.0)
    W, b = init_params(k_p1, in_size, out_size)
    gamma = jax.block_until_ready(temporal_decay_forward(d, W, b, diag=False))
    ref = reference_forward(d, W, b, diag=False)
    assert gamma.shape == ref.shape
    assert jnp.allclose(gamma, ref, atol=1e-5, rtol=1e-5), "non-diag mismatch"

    # Case 2: diag fast path (input_size == output_size, elementwise kernel,
    #         zero padding anywhere).  Params prepared once, reused twice.
    Wd, bd = init_params(k_p2, in_size, in_size)
    pd = prepare_params(Wd, bd, diag=True)
    gamma_d = jax.block_until_ready(temporal_decay_forward_prepared(d, pd))
    gamma_d2 = jax.block_until_ready(temporal_decay_forward_prepared(d, pd))
    ref_d = reference_forward(d, Wd, bd, diag=True)
    assert jnp.allclose(gamma_d, ref_d, atol=1e-5, rtol=1e-5), "diag mismatch"
    assert jnp.allclose(gamma_d2, ref_d, atol=1e-5, rtol=1e-5), "diag reuse mismatch"

    # Case 3: ragged batch + multi-step grid (batch not a multiple of block_b;
    #         no jnp.pad of d — boundary block is masked by Pallas).
    batch3 = 44
    d3 = jax.random.uniform(k_d3, (batch3, in_size), jnp.float32,
                            minval=0.0, maxval=5.0)
    W3, b3 = init_params(k_p3, in_size, out_size)
    gamma3 = jax.block_until_ready(
        temporal_decay_forward(d3, W3, b3, diag=False, block_b=16))
    ref3 = reference_forward(d3, W3, b3, diag=False)
    assert jnp.allclose(gamma3, ref3, atol=1e-5, rtol=1e-5), "ragged mismatch"

    # Case 4: bf16 I/O end-to-end (bf16 activations from upstream, bf16 params
    #         prepared once, bf16 gamma out) — no wrapper-side cast pass on d.
    batch4 = 16
    d4 = jax.random.uniform(k_d4, (batch4, in_size), jnp.float32,
                            minval=0.0, maxval=5.0).astype(jnp.bfloat16)
    p4 = prepare_params(W, b, diag=False, param_dtype=jnp.bfloat16)
    gamma4 = jax.block_until_ready(
        temporal_decay_forward_prepared(d4, p4, out_dtype=jnp.bfloat16))
    ref4 = reference_forward(d4, W, b, diag=False)
    assert gamma4.dtype == jnp.bfloat16
    assert jnp.allclose(gamma4.astype(jnp.float32), ref4,
                        atol=3e-2, rtol=3e-2), "bf16 mismatch"

    print("KERNEL_OK")
</pallas_src>

<mosaic_0001>
module attributes {stable_mosaic.version = 11 : i64} {
  func.func @_td_matmul_kernel(%arg0: i32, %arg1: i32, %arg2: memref<8x32xf32, #tpu.memory_space<vmem>>, %arg3: memref<32x128xf32, #tpu.memory_space<vmem>>, %arg4: memref<1x128xf32, #tpu.memory_space<vmem>>, %arg5: memref<8x128xf32, #tpu.memory_space<vmem>>) attributes {dimension_semantics = [#tpu.dimension_semantics<parallel>, #tpu.dimension_semantics<parallel>], iteration_bounds = array<i64: 1, 1>, scalar_prefetch = 0 : i64, scratch_operands = 0 : i64, tpu.core_type = #tpu.core_type<tc>, window_params = [{transform_indices = @transform_0, window_bounds = array<i64: 8, 32>}, {transform_indices = @transform_1, window_bounds = array<i64: 32, 128>}, {pipeline_mode = #tpu.pipeline_mode<synchronous>, transform_indices = @transform_2, window_bounds = array<i64: 1, 128>}, {transform_indices = @transform_3, window_bounds = array<i64: 8, 128>}]} {
    %c0 = arith.constant 0 : index
    %c0_0 = arith.constant 0 : index
    %0 = vector.load %arg2[%c0, %c0_0] : memref<8x32xf32, #tpu.memory_space<vmem>>, vector<8x32xf32>
    %c0_1 = arith.constant 0 : index
    %c0_2 = arith.constant 0 : index
    %1 = vector.load %arg3[%c0_1, %c0_2] : memref<32x128xf32, #tpu.memory_space<vmem>>, vector<32x128xf32>
    %cst = arith.constant dense<0.000000e+00> : vector<8x128xf32>
    %2 = tpu.matmul %0, %1, %cst {dimension_numbers = #tpu.dot_dimension_numbers<[1], [0], [0], [1], [0, 0, 1, 1], [], []>} : vector<8x32xf32>, vector<32x128xf32>, vector<8x128xf32> -> vector<8x128xf32>
    %c0_3 = arith.constant 0 : index
    %c0_4 = arith.constant 0 : index
    %3 = vector.load %arg4[%c0_3, %c0_4] : memref<1x128xf32, #tpu.memory_space<vmem>>, vector<1x128xf32>
    %4 = vector.broadcast %3 : vector<1x128xf32> to vector<8x128xf32>
    %5 = arith.addf %2, %4 : vector<8x128xf32>
    %cst_5 = arith.constant 0.000000e+00 : f32
    %6 = vector.broadcast %cst_5 : f32 to vector<8x128xf32>
    %7 = arith.maximumf %5, %6 : vector<8x128xf32>
    %cst_6 = arith.constant 0.000000e+00 : f32
    %8 = vector.broadcast %cst_6 : f32 to vector<8x128xf32>
    %9 = arith.subf %8, %7 : vector<8x128xf32>
    %10 = math.exp %9 : vector<8x128xf32>
    %c0_7 = arith.constant 0 : index
    %c0_8 = arith.constant 0 : index
    %11 = vector.load %arg5[%c0_7, %c0_8] : memref<8x128xf32, #tpu.memory_space<vmem>>, vector<8x128xf32>
    tpu.vector_store %arg5[%c0_7, %c0_8], %10 {strides = array<i32>} : memref<8x128xf32, #tpu.memory_space<vmem>>, vector<8x128xf32>,
    return
  }
  func.func @transform_0(%arg0: i32, %arg1: i32) -> (i32, i32) {
    %c0_i32 = arith.constant 0 : i32
    %c0_i32_0 = arith.constant 0 : i32
    return %arg0, %c0_i32 : i32, i32
  }
  func.func @transform_1(%arg0: i32, %arg1: i32) -> (i32, i32) {
    %c0_i32 = arith.constant 0 : i32
    %c0_i32_0 = arith.constant 0 : i32
    return %c0_i32, %arg1 : i32, i32
  }
  func.func @transform_2(%arg0: i32, %arg1: i32) -> (i32, i32) {
    %c0_i32 = arith.constant 0 : i32
    %c0_i32_0 = arith.constant 0 : i32
    %c0_i32_1 = arith.constant 0 : i32
    return %c0_i32, %c0_i32_0 : i32, i32
  }
  func.func @transform_3(%arg0: i32, %arg1: i32) -> (i32, i32) {
    %c0_i32 = arith.constant 0 : i32
    return %arg0, %arg1 : i32, i32
  }
}

</mosaic_0001>

<llo_original>
// kernel: tpu_custom_call.1
$region0: #{tpu_custom_call.1}
  #allocation0 [shape = 'u32[]', space=smem, size = 0x4, offset = 0x4, fixed_abs, tag = 'smem constant byte address 0x4 - core index']
  #allocation1 [shape = 'u32[144,128]{1,0:T(1,128)}', space=vmem, size = 0x12000, scoped, tag = 'internal scratch']
  %s0 = inlined_call_operand.hbm [shape: f32[8,32], index: 0, kind: input, shape index: {}]
  %s1 = inlined_call_operand.hbm [shape: f32[32,128], index: 1, kind: input, shape index: {}]
  %s2 = inlined_call_operand.vmem [shape: f32[1,128], index: 2, kind: input, shape index: {}]
  %s3 = inlined_call_operand.hbm [shape: f32[8,128], index: 3, kind: output, shape index: {}]
  %s4 = sld [smem:[#allocation0]]
  $region30: #{tpu_custom_call.1} parent=0
    _
  %s6 = ssub.s32 1, %s4
  %s7 = scalar_select 0, %s6, %s4
  $region1: #{tpu_custom_call.1} parent=0
    #allocation2 [shape = 'u8[4096]{0}', space=vmem, size = 0x1000, scoped, tag = 'input window, operand 0, single buffered']
    #allocation3 [shape = 's32[1]{0}', space=sflag, size = 0x4, scoped, tag = 'scoped memory for tpu_custom_call.1']
    #allocation4 [shape = 's32[1]{0}', space=sflag, size = 0x4, scoped, tag = 'scoped memory for tpu_custom_call.1']
    #allocation5 [shape = 'u8[16384]{0}', space=vmem, size = 0x4000, scoped, tag = 'input window, operand 1, single buffered']
    #allocation6 [shape = 's32[1]{0}', space=sflag, size = 0x4, scoped, tag = 'scoped memory for tpu_custom_call.1']
    #allocation7 [shape = 'u8[4096]{0}', space=vmem, size = 0x1000, scoped, tag = 'output window, operand 0, single buffered']
    %8 = vsyncpa [#allocation3], 0
    %9 = vsyncpa [#allocation6], 0
    %10 = vsyncpa [#allocation4], 0
    // Predicated region
    $region2: #{tpu_custom_call.1} parent=1 // pred_check
      _
    $region3: #{tpu_custom_call.1} parent=1 // pred_check_branch
      %12 = sbr.rel (0) target = $region5
    $region4: #{tpu_custom_call.1} parent=1 // pred_region
      %s14 = ssub.s32 128, 128
      %15 = vsyncadd [#allocation3], %s14
      %s17 = sshll.u32 [#allocation2], 4
      %s18 = int_to_ptr.vmem [resolvable:$true] %s17
      %20 = dma.hbm_to_vmem [thread:$0]  %s0, 128, %s18, [#allocation3]
    $region5: #{tpu_custom_call.1} parent=1 // pred_fallthru
      _
    // Predicated region
    $region6: #{tpu_custom_call.1} parent=1 // pred_check
      _
    $region7: #{tpu_custom_call.1} parent=1 // pred_check_branch
      %22 = sbr.rel (0) target = $region9
    $region8: #{tpu_custom_call.1} parent=1 // pred_region
      %s24 = ssub.s32 512, 512
      %25 = vsyncadd [#allocation6], %s24
      %s26 = sshll.u32 [#allocation5], 4
      %s27 = int_to_ptr.vmem [resolvable:$true] %s26
      %32 = dma.hbm_to_vmem [thread:$0]  %s1, 512, %s27, [#allocation6], 128, 128, 8
    $region9: #{tpu_custom_call.1} parent=1 // pred_fallthru
      _
    // Predicated region
    $region10: #{tpu_custom_call.1} parent=1 // pred_check
      _
    $region11: #{tpu_custom_call.1} parent=1 // pred_check_branch
      %34 = sbr.rel (0) target = $region13
    $region12: #{tpu_custom_call.1} parent=1 // pred_region
      _
    $region13: #{tpu_custom_call.1} parent=1 // pred_fallthru
      _
    // Predicated region
    $region14: #{tpu_custom_call.1} parent=1 // pred_check
      _
    $region15: #{tpu_custom_call.1} parent=1 // pred_check_branch
      %36 = sbr.rel (0) target = $region17
    $region16: #{tpu_custom_call.1} parent=1 // pred_region
      %37 = dma.done [#allocation3], 128
    $region17: #{tpu_custom_call.1} parent=1 // pred_fallthru
      _
    // Predicated region
    $region18: #{tpu_custom_call.1} parent=1 // pred_check
      _
    $region19: #{tpu_custom_call.1} parent=1 // pred_check_branch
      %39 = sbr.rel (0) target = $region21
    $region20: #{tpu_custom_call.1} parent=1 // pred_region
      %40 = dma.done [#allocation6], 512
    $region21: #{tpu_custom_call.1} parent=1 // pred_fallthru
      _
    %v41 = vld [vmem:[#allocation2] sm:$0xff]
    %v42 = vld [vmem:[#allocation5] sm:$0xff]
    %v43 = vld [vmem:[#allocation5 + $0x8] sm:$0xff]
    %v44 = vld [vmem:[#allocation5 + $0x10] sm:$0xff]
    %v45 = vld [vmem:[#allocation5 + $0x18] sm:$0xff]
    %v46 = vld [vmem:[%s2] sm:$0x1]
    %v48 = vlaneseq
    %v49 = vshrl.u32 %v48, 7
    %v50 = vsub.s32 0, %v49
    %v51 = vrot.slane %v46, %v50
    %vm53 = vcmask 261120
    %v55 = vsel %vm53, %v41, 0
    %57 = vmatprep.subr.mxu0 0.0
    %58 = vmatpush1.msra.mxu0 0.0
    %59 = vmatprep.subr.mxu0 0.0
    %60 = vmatpush1.msra.mxu0 0.0
    %61 = vmatprep.subr.mxu0 0.0
    %62 = vmatpush1.msra.mxu0 0.0
    %63 = vmatprep.subr.mxu0 0.0
    %64 = vmatpush1.msra.mxu0 0.0
    %65 = vmatprep.subr.mxu0 0.0
    %66 = vmatpush1.msra.mxu0 0.0
    %67 = vmatprep.subr.mxu0 0.0
    %68 = vmatpush1.msra.mxu0 0.0
    %69 = vmatprep.subr.mxu0 0.0
    %70 = vmatpush1.msra.mxu0 0.0
    %71 = vmatprep.subr.mxu0 0.0
    %72 = vmatpush1.msra.mxu0 0.0
    %73 = vmatprep.subr.mxu0 0.0
    %74 = vmatpush1.msra.mxu0 0.0
    %75 = vmatprep.subr.mxu0 0.0
    %76 = vmatpush1.msra.mxu0 0.0
    %77 = vmatprep.subr.mxu0 0.0
    %78 = vmatpush1.msra.mxu0 0.0
    %79 = vmatprep.subr.mxu0 0.0
    %80 = vmatpush1.msra.mxu0 0.0
    %81 = vmatprep.subr.mxu0 0.0
    %82 = vmatpush1.msra.mxu0 %v45
    %83 = vmatprep.subr.mxu0 0.0
    %84 = vmatpush1.msra.mxu0 %v44
    %85 = vmatprep.subr.mxu0 0.0
    %86 = vmatpush1.msra.mxu0 %v43
    %87 = vmatprep.subr.mxu0 0.0
    %88 = vmatpush1.msra.mxu0 %v42
    %89 = vmatprep.subr.mxu0 0.0
    %90 = vmatpush2.msra.mxu0 0.0
    %91 = vmatprep.subr.mxu0 0.0
    %92 = vmatpush2.msra.mxu0 0.0
    %93 = vmatprep.subr.mxu0 0.0
    %94 = vmatpush2.msra.mxu0 0.0
    %95 = vmatprep.subr.mxu0 0.0
    %96 = vmatpush2.msra.mxu0 0.0
    %97 = vmatprep.subr.mxu0 0.0
    %98 = vmatpush2.msra.mxu0 0.0
    %99 = vmatprep.subr.mxu0 0.0
    %100 = vmatpush2.msra.mxu0 0.0
    %101 = vmatprep.subr.mxu0 0.0
    %102 = vmatpush2.msra.mxu0 0.0
    %103 = vmatprep.subr.mxu0 0.0
    %104 = vmatpush2.msra.mxu0 0.0
    %105 = vmatprep.subr.mxu0 0.0
    %106 = vmatpush2.msra.mxu0 0.0
    %107 = vmatprep.subr.mxu0 0.0
    %108 = vmatpush2.msra.mxu0 0.0
    %109 = vmatprep.subr.mxu0 0.0
    %110 = vmatpush2.msra.mxu0 0.0
    %111 = vmatprep.subr.mxu0 0.0
    %112 = vmatpush2.msra.mxu0 0.0
    %113 = vmatprep.subr.mxu0 0.0
    %114 = vmatpush2.msra.mxu0 0.0
    %115 = vmatprep.subr.mxu0 0.0
    %116 = vmatpush2.msra.mxu0 0.0
    %117 = vmatprep.subr.mxu0 0.0
    %118 = vmatpush2.msra.mxu0 0.0
    %119 = vmatprep.subr.mxu0 0.0
    %120 = vmatpush2.msra.mxu0 0.0
    %121 = vmatprep.mubr.f32.mxu0 0.0
    %122 = vmatmul.mubr.f32.gmra.mxu0 %v55
    %v123 = vpop.f32.mrf.mxu0
    %v124 = vadd.f32 %v51, %v123
    %v125 = vpop.f32.mrf.mxu0
    %126 = vdwg.mxu0
    %v127 = vmax.f32 %v124, 0.0
    %v128 = vsub.f32 0.0, %v127
    %v129 = vmul.f32 %v128, 1.442695
    %v130 = vpow.pop %v129
    %131 = vst [vmem:[#allocation7] sm:$0xff] %v130
    // Predicated region
    $region22: #{tpu_custom_call.1} parent=1 // pred_check
      _
    $region23: #{tpu_custom_call.1} parent=1 // pred_check_branch
      %133 = sbr.rel (0) target = $region25
    $region24: #{tpu_custom_call.1} parent=1 // pred_region
      %s135 = ssub.s32 128, 128
      %136 = vsyncadd [#allocation4], %s135
      %s138 = sshll.u32 [#allocation7], 4
      %s139 = int_to_ptr.vmem [resolvable:$true] %s138
      %141 = dma.vmem_to_hbm [thread:$0]  %s139, 128, %s3, [#allocation4]
    $region25: #{tpu_custom_call.1} parent=1 // pred_fallthru
      _
    // Predicated region
    $region26: #{tpu_custom_call.1} parent=1 // pred_check
      _
    $region27: #{tpu_custom_call.1} parent=1 // pred_check_branch
      %143 = sbr.rel (0) target = $region29
    $region28: #{tpu_custom_call.1} parent=1 // pred_region
      %144 = dma.done [#allocation4], 128
    $region29: #{tpu_custom_call.1} parent=1 // pred_fallthru
      _
    %145 = vsyncpa [#allocation3], 1
    %146 = vsyncpa [#allocation6], 1
    %147 = vsyncpa [#allocation4], 1

</llo_original>
